<compile_context>
chip_gen: v5e
topology: v5e:2x2
jax: 0.10.0
libtpu: 0.0.40
codegen_flags: <defaults>
</compile_context>

<pallas_src>
import jax
import jax.numpy as jnp
from jax.experimental import pallas as pl
from jax.experimental.pallas import tpu as pltpu

# ---- model hyper-params (consistent with NetworkSettings) ------------------
OBS_DIM = 16        # vector observation size
HIDDEN = 32         # network_settings.hidden_units
BATCH = 250         # mini-batch size (deliberately NOT a multiple of the tile)

PACK = 8                       # batch rows packed per lane-dense row
MAX_PACKED_TILE = 8192         # packed rows per grid step (= 65536 batch rows)
MIN_SPLIT_PACKED_ROWS = 512    # never megacore-split below this per-core size


def _swish_f32(v):
    # ml-agents "Swish" == x * sigmoid(x) == 0.5*x*(1 + tanh(0.5*x)).
    # Single EUP transcendental per element (tanh), exact sigmoid identity.
    return 0.5 * v * (1.0 + jnp.tanh(0.5 * v))


def rnd_mlp_kernel(x_ref, w1_ref, b1_ref, w2_ref, b2_ref, o_ref):
    """Fused 2-layer Swish MLP (LinearEncoder) on lane-dense packed rows.

    x_ref : [TBP, OBS_DIM*PACK]          bf16  (PACK batch rows per packed row)
    w1_ref: [OBS_DIM*PACK, HIDDEN*PACK]  bf16  block-diagonal W1 (resident)
    w2_ref: [HIDDEN*PACK, HIDDEN*PACK]   bf16  block-diagonal W2 (resident)
    b*_ref: [1, HIDDEN*PACK]             f32   bias tiled PACK times
    o_ref : [TBP, HIDDEN*PACK]           bf16  lane-dense output
    """
    x = x_ref[...]
    # layer 1: Linear(obs_dim -> hidden) + Swish   (f32 accumulation)
    h = jnp.dot(x, w1_ref[...], preferred_element_type=jnp.float32) + b1_ref[...]
    h = _swish_f32(h)
    h = h.astype(w2_ref.dtype)          # bf16 MXU input for layer 2
    # layer 2: Linear(hidden -> hidden) + Swish
    y = jnp.dot(h, w2_ref[...], preferred_element_type=jnp.float32) + b2_ref[...]
    y = _swish_f32(y)
    o_ref[...] = y.astype(o_ref.dtype)


def _round_up(n, m):
    return ((n + m - 1) // m) * m


def _num_tensorcores():
    """2 TensorCores only on v7x; v5e/v6e are single-TC."""
    try:
        kind = jax.devices()[0].device_kind.lower()
        if "v7" in kind or "7x" in kind:
            return 2
    except Exception:
        pass
    return 1


def _choose_packed_tile(bp_pad, num_cores):
    """Packed-row tile: multiple of 16 sublanes, as large as possible.

    Split for megacore only when the device has 2 TCs AND each half keeps at
    least MIN_SPLIT_PACKED_ROWS packed rows; otherwise one big tile.
    """
    tbp = min(_round_up(bp_pad, 16), MAX_PACKED_TILE)
    if num_cores >= 2 and pl.cdiv(bp_pad, tbp) < 2:
        half = _round_up(pl.cdiv(tbp, 2), 16)
        if half >= MIN_SPLIT_PACKED_ROWS:
            tbp = half
    return tbp


def _block_diag(w, pack):
    """[din, dout] -> block-diagonal [pack*din, pack*dout] (host-side, tiny)."""
    din, dout = w.shape
    zeros = jnp.zeros((din, dout), w.dtype)
    rows = [jnp.concatenate([w if c == r else zeros for c in range(pack)], axis=1)
            for r in range(pack)]
    return jnp.concatenate(rows, axis=0)


def pack_params(w1, b1, w2, b2, pack=PACK):
    """Precompute packed (block-diagonal, bf16) parameters ONCE at init /
    param-update time -- not per forward call."""
    w1p = _block_diag(w1, pack).astype(jnp.bfloat16)                         # [dp, hp]
    w2p = _block_diag(w2, pack).astype(jnp.bfloat16)                         # [hp, hp]
    b1p = jnp.tile(jnp.reshape(b1, (1, -1)), (1, pack)).astype(jnp.float32)  # [1, hp]
    b2p = jnp.tile(jnp.reshape(b2, (1, -1)), (1, pack)).astype(jnp.float32)  # [1, hp]
    return w1p, b1p, w2p, b2p


def rnd_network_forward(x, w1p, b1p, w2p, b2p):
    """x: [B, OBS_DIM] -> hidden: [B, HIDDEN] (bf16 I/O, f32 accumulation)."""
    B, D = x.shape
    dp, hp = w1p.shape
    pack = dp // D
    H = hp // pack

    # --- pack & lightly pad the batch: [B, D] -> [bp_pad, D*pack] -----------
    # Pad only to a multiple of 16 packed rows (bf16 native sublane tile); the
    # grid handles any remaining raggedness via pl.cdiv (last block padded by
    # Pallas, garbage rows cropped by [:B] below).
    bp = pl.cdiv(B, pack)
    bp_pad = _round_up(bp, 16)
    tbp = _choose_packed_tile(bp_pad, _num_tensorcores())

    x_p = x.astype(jnp.bfloat16)
    pad_rows = bp_pad * pack - B
    if pad_rows:
        x_p = jnp.pad(x_p, ((0, pad_rows), (0, 0)))
    x_wide = x_p.reshape(bp_pad, dp)     # bit-identical row-major reshape

    grid = (pl.cdiv(bp_pad, tbp),)
    cost = pl.CostEstimate(
        # MXU work actually issued (block-diagonal operands).
        flops=2 * bp_pad * (dp * hp + hp * hp),
        # One tanh per element per layer.
        transcendentals=2 * bp_pad * hp,
        bytes_accessed=(bp_pad * dp + bp_pad * hp + dp * hp + hp * hp) * 2
        + 2 * hp * 4,
    )

    out_wide = pl.pallas_call(
        rnd_mlp_kernel,
        out_shape=jax.ShapeDtypeStruct((bp_pad, hp), jnp.bfloat16),
        grid_spec=pltpu.PrefetchScalarGridSpec(
            num_scalar_prefetch=0,
            grid=grid,
            in_specs=[
                pl.BlockSpec((tbp, dp), lambda i: (i, 0)),   # packed obs tile
                pl.BlockSpec((dp, hp), lambda i: (0, 0)),    # W1 block-diag (resident)
                pl.BlockSpec((1, hp), lambda i: (0, 0)),     # b1 (resident)
                pl.BlockSpec((hp, hp), lambda i: (0, 0)),    # W2 block-diag (resident)
                pl.BlockSpec((1, hp), lambda i: (0, 0)),     # b2 (resident)
            ],
            out_specs=pl.BlockSpec((tbp, hp), lambda i: (i, 0)),
        ),
        compiler_params=pltpu.CompilerParams(
            dimension_semantics=("parallel",),
            # Explicit cap: ~12 MiB double-buffered at the max tile; keeps us
            # safe under v5e's 16 MiB default scoped-VMEM limit and within
            # v7x's 64 MiB physical VMEM.
            vmem_limit_bytes=32 * 1024 * 1024,
        ),
        cost_estimate=cost,
    )(x_wide, w1p, b1p, w2p, b2p)

    # lane-dense [bp_pad, hp] slab -> [B, HIDDEN]: bit-identical reshape + crop
    return out_wide.reshape(bp_pad * pack, H)[:B]


def init_params(key):
    """Kaiming-He-ish init matching LinearEncoder shapes (zero biases)."""
    k1, k2 = jax.random.split(key)
    w1 = jax.random.normal(k1, (OBS_DIM, HIDDEN), jnp.float32) * (2.0 / OBS_DIM) ** 0.5
    b1 = jnp.zeros((HIDDEN,), jnp.float32)
    w2 = jax.random.normal(k2, (HIDDEN, HIDDEN), jnp.float32) * (2.0 / HIDDEN) ** 0.5
    b2 = jnp.zeros((HIDDEN,), jnp.float32)
    return w1, b1, w2, b2


def reference_forward(x, w1, b1, w2, b2):
    swish = lambda v: v * jax.nn.sigmoid(v)
    h = swish(x @ w1 + b1[None, :])
    return swish(h @ w2 + b2[None, :])


if __name__ == "__main__":
    key = jax.random.PRNGKey(0)
    kx, kp = jax.random.split(key)

    # synthetic vector observations (ObsUtil.from_buffer -> tensors); single obs spec
    x = jax.random.normal(kx, (BATCH, OBS_DIM), jnp.float32)
    w1, b1, w2, b2 = init_params(kp)

    # Packed weights are built once here (init / param-update time), not per call.
    packed = pack_params(w1, b1, w2, b2)

    # TODO(synk): self._encoder.update_normalization(mini_batch) is a training-time
    # running-stat update on the AgentBuffer, not part of the numeric forward output.

    fwd = jax.jit(rnd_network_forward)
    hidden = fwd(x, *packed)
    jax.block_until_ready(hidden)
    assert hidden.shape == (BATCH, HIDDEN)

    # Reference: f32 math on the same bf16-rounded inputs the kernel consumes
    # (kernel uses bf16 HBM I/O + f32 accumulation + bf16 output cast).
    bf = lambda a: a.astype(jnp.bfloat16).astype(jnp.float32)
    ref = reference_forward(bf(x), bf(w1), b1, bf(w2), b2)
    assert jnp.allclose(hidden.astype(jnp.float32), ref, atol=5e-2, rtol=5e-2), (
        float(jnp.max(jnp.abs(hidden.astype(jnp.float32) - ref)))
    )

    print("KERNEL_OK")
</pallas_src>

<mosaic_0001>
module attributes {stable_mosaic.version = 11 : i64} {
  func.func @rnd_mlp_kernel(%arg0: i32, %arg1: memref<32x128xbf16, #tpu.memory_space<vmem>>, %arg2: memref<128x256xbf16, #tpu.memory_space<vmem>>, %arg3: memref<1x256xf32, #tpu.memory_space<vmem>>, %arg4: memref<256x256xbf16, #tpu.memory_space<vmem>>, %arg5: memref<1x256xf32, #tpu.memory_space<vmem>>, %arg6: memref<32x256xbf16, #tpu.memory_space<vmem>>) attributes {dimension_semantics = [#tpu.dimension_semantics<parallel>], iteration_bounds = array<i64: 1>, scalar_prefetch = 0 : i64, scratch_operands = 0 : i64, tpu.core_type = #tpu.core_type<tc>, window_params = [{transform_indices = @transform_0, window_bounds = array<i64: 32, 128>}, {pipeline_mode = #tpu.pipeline_mode<synchronous>, transform_indices = @transform_1, window_bounds = array<i64: 128, 256>}, {pipeline_mode = #tpu.pipeline_mode<synchronous>, transform_indices = @transform_2, window_bounds = array<i64: 1, 256>}, {pipeline_mode = #tpu.pipeline_mode<synchronous>, transform_indices = @transform_3, window_bounds = array<i64: 256, 256>}, {pipeline_mode = #tpu.pipeline_mode<synchronous>, transform_indices = @transform_4, window_bounds = array<i64: 1, 256>}, {transform_indices = @transform_5, window_bounds = array<i64: 32, 256>}]} {
    %c0 = arith.constant 0 : index
    %c0_0 = arith.constant 0 : index
    %0 = vector.load %arg1[%c0, %c0_0] : memref<32x128xbf16, #tpu.memory_space<vmem>>, vector<32x128xbf16>
    %c0_1 = arith.constant 0 : index
    %c0_2 = arith.constant 0 : index
    %1 = vector.load %arg2[%c0_1, %c0_2] : memref<128x256xbf16, #tpu.memory_space<vmem>>, vector<128x256xbf16>
    %cst = arith.constant dense<0.000000e+00> : vector<32x256xf32>
    %2 = tpu.matmul %0, %1, %cst {dimension_numbers = #tpu.dot_dimension_numbers<[1], [0], [0], [1], [0, 0, 1, 1], [], []>} : vector<32x128xbf16>, vector<128x256xbf16>, vector<32x256xf32> -> vector<32x256xf32>
    %c0_3 = arith.constant 0 : index
    %c0_4 = arith.constant 0 : index
    %3 = vector.load %arg3[%c0_3, %c0_4] : memref<1x256xf32, #tpu.memory_space<vmem>>, vector<1x256xf32>
    %4 = vector.broadcast %3 : vector<1x256xf32> to vector<32x256xf32>
    %5 = arith.addf %2, %4 : vector<32x256xf32>
    %cst_5 = arith.constant 5.000000e-01 : f32
    %6 = vector.broadcast %cst_5 : f32 to vector<32x256xf32>
    %7 = arith.mulf %6, %5 : vector<32x256xf32>
    %cst_6 = arith.constant 5.000000e-01 : f32
    %8 = vector.broadcast %cst_6 : f32 to vector<32x256xf32>
    %9 = arith.mulf %8, %5 : vector<32x256xf32>
    %10 = math.tanh %9 : vector<32x256xf32>
    %cst_7 = arith.constant 1.000000e+00 : f32
    %11 = vector.broadcast %cst_7 : f32 to vector<32x256xf32>
    %12 = arith.addf %11, %10 : vector<32x256xf32>
    %13 = arith.mulf %7, %12 : vector<32x256xf32>
    %14 = arith.truncf %13 : vector<32x256xf32> to vector<32x256xbf16>
    %c0_8 = arith.constant 0 : index
    %c0_9 = arith.constant 0 : index
    %15 = vector.load %arg4[%c0_8, %c0_9] : memref<256x256xbf16, #tpu.memory_space<vmem>>, vector<256x256xbf16>
    %cst_10 = arith.constant dense<0.000000e+00> : vector<32x256xf32>
    %16 = tpu.matmul %14, %15, %cst_10 {dimension_numbers = #tpu.dot_dimension_numbers<[1], [0], [0], [1], [0, 0, 1, 1], [], []>} : vector<32x256xbf16>, vector<256x256xbf16>, vector<32x256xf32> -> vector<32x256xf32>
    %c0_11 = arith.constant 0 : index
    %c0_12 = arith.constant 0 : index
    %17 = vector.load %arg5[%c0_11, %c0_12] : memref<1x256xf32, #tpu.memory_space<vmem>>, vector<1x256xf32>
    %18 = vector.broadcast %17 : vector<1x256xf32> to vector<32x256xf32>
    %19 = arith.addf %16, %18 : vector<32x256xf32>
    %cst_13 = arith.constant 5.000000e-01 : f32
    %20 = vector.broadcast %cst_13 : f32 to vector<32x256xf32>
    %21 = arith.mulf %20, %19 : vector<32x256xf32>
    %cst_14 = arith.constant 5.000000e-01 : f32
    %22 = vector.broadcast %cst_14 : f32 to vector<32x256xf32>
    %23 = arith.mulf %22, %19 : vector<32x256xf32>
    %24 = math.tanh %23 : vector<32x256xf32>
    %cst_15 = arith.constant 1.000000e+00 : f32
    %25 = vector.broadcast %cst_15 : f32 to vector<32x256xf32>
    %26 = arith.addf %25, %24 : vector<32x256xf32>
    %27 = arith.mulf %21, %26 : vector<32x256xf32>
    %28 = arith.truncf %27 : vector<32x256xf32> to vector<32x256xbf16>
    %c0_16 = arith.constant 0 : index
    %c0_17 = arith.constant 0 : index
    %29 = vector.load %arg6[%c0_16, %c0_17] : memref<32x256xbf16, #tpu.memory_space<vmem>>, vector<32x256xbf16>
    tpu.vector_store %arg6[%c0_16, %c0_17], %28 {strides = array<i32>} : memref<32x256xbf16, #tpu.memory_space<vmem>>, vector<32x256xbf16>,
    return
  }
  func.func @transform_0(%arg0: i32) -> (i32, i32) {
    %c0_i32 = arith.constant 0 : i32
    %c0_i32_0 = arith.constant 0 : i32
    return %arg0, %c0_i32 : i32, i32
  }
  func.func @transform_1(%arg0: i32) -> (i32, i32) {
    %c0_i32 = arith.constant 0 : i32
    %c0_i32_0 = arith.constant 0 : i32
    %c0_i32_1 = arith.constant 0 : i32
    return %c0_i32, %c0_i32_0 : i32, i32
  }
  func.func @transform_2(%arg0: i32) -> (i32, i32) {
    %c0_i32 = arith.constant 0 : i32
    %c0_i32_0 = arith.constant 0 : i32
    %c0_i32_1 = arith.constant 0 : i32
    return %c0_i32, %c0_i32_0 : i32, i32
  }
  func.func @transform_3(%arg0: i32) -> (i32, i32) {
    %c0_i32 = arith.constant 0 : i32
    %c0_i32_0 = arith.constant 0 : i32
    %c0_i32_1 = arith.constant 0 : i32
    return %c0_i32, %c0_i32_0 : i32, i32
  }
  func.func @transform_4(%arg0: i32) -> (i32, i32) {
    %c0_i32 = arith.constant 0 : i32
    %c0_i32_0 = arith.constant 0 : i32
    %c0_i32_1 = arith.constant 0 : i32
    return %c0_i32, %c0_i32_0 : i32, i32
  }
  func.func @transform_5(%arg0: i32) -> (i32, i32) {
    %c0_i32 = arith.constant 0 : i32
    %c0_i32_0 = arith.constant 0 : i32
    return %arg0, %c0_i32 : i32, i32
  }
}

</mosaic_0001>

<llo_original>
// kernel: rnd_network_forward.1
$region0: #{rnd_network_forward.1}
  #allocation0 [shape = 'u32[]', space=smem, size = 0x4, offset = 0x4, fixed_abs, tag = 'smem constant byte address 0x4 - core index']
  #allocation1 [shape = 'u32[72,128]{1,0:T(1,128)}', space=vmem, size = 0x9000, scoped, tag = 'internal scratch']
  %s0 = inlined_call_operand.vmem [shape: bf16[32,128], index: 0, kind: input, shape index: {}]
  %s1 = inlined_call_operand.vmem [shape: bf16[128,256], index: 1, kind: input, shape index: {}]
  %s2 = inlined_call_operand.vmem [shape: f32[1,256], index: 2, kind: input, shape index: {}]
  %s3 = inlined_call_operand.vmem [shape: bf16[256,256], index: 3, kind: input, shape index: {}]
  %s4 = inlined_call_operand.vmem [shape: f32[1,256], index: 4, kind: input, shape index: {}]
  %s5 = inlined_call_operand.vmem [shape: bf16[32,256], index: 5, kind: output, shape index: {}]
  %s6 = sld [smem:[#allocation0]]
  $region30: #{rnd_network_forward.1} parent=0
    _
  %s8 = ssub.s32 1, %s6
  %s9 = scalar_select 0, %s8, %s6
  // Predicated region
  $region2: #{rnd_network_forward.1} parent=0 // pred_check
    _
  $region3: #{rnd_network_forward.1} parent=0 // pred_check_branch
    %11 = sbr.rel (0) target = $region5
  $region4: #{rnd_network_forward.1} parent=0 // pred_region
    _
  $region5: #{rnd_network_forward.1} parent=0 // pred_fallthru
    _
  // Predicated region
  $region6: #{rnd_network_forward.1} parent=0 // pred_check
    _
  $region7: #{rnd_network_forward.1} parent=0 // pred_check_branch
    %13 = sbr.rel (0) target = $region9
  $region8: #{rnd_network_forward.1} parent=0 // pred_region
    _
  $region9: #{rnd_network_forward.1} parent=0 // pred_fallthru
    _
  // Predicated region
  $region10: #{rnd_network_forward.1} parent=0 // pred_check
    _
  $region11: #{rnd_network_forward.1} parent=0 // pred_check_branch
    %15 = sbr.rel (0) target = $region13
  $region12: #{rnd_network_forward.1} parent=0 // pred_region
    _
  $region13: #{rnd_network_forward.1} parent=0 // pred_fallthru
    _
  // Predicated region
  $region14: #{rnd_network_forward.1} parent=0 // pred_check
    _
  $region15: #{rnd_network_forward.1} parent=0 // pred_check_branch
    %17 = sbr.rel (0) target = $region17
  $region16: #{rnd_network_forward.1} parent=0 // pred_region
    _
  $region17: #{rnd_network_forward.1} parent=0 // pred_fallthru
    _
  // Predicated region
  $region18: #{rnd_network_forward.1} parent=0 // pred_check
    _
  $region19: #{rnd_network_forward.1} parent=0 // pred_check_branch
    %19 = sbr.rel (0) target = $region21
  $region20: #{rnd_network_forward.1} parent=0 // pred_region
    _
  $region21: #{rnd_network_forward.1} parent=0 // pred_fallthru
    _
  %v20 = vld [vmem:[%s0] sm:$0xf]
  %v21 = vld [vmem:[%s0 + $0x4] sm:$0xf]
  %v22 = vld [vmem:[%s0 + $0x8] sm:$0xf]
  %v23 = vld [vmem:[%s0 + $0xc] sm:$0xf]
  %v24 = vld [vmem:[%s1] sm:$0xff]
  %v25 = vld [vmem:[%s1 + $0x8] sm:$0xff]
  %v26 = vld [vmem:[%s1 + $0x10] sm:$0xff]
  %v27 = vld [vmem:[%s1 + $0x18] sm:$0xff]
  %v28 = vld [vmem:[%s1 + $0x20] sm:$0xff]
  %v29 = vld [vmem:[%s1 + $0x28] sm:$0xff]
  %v30 = vld [vmem:[%s1 + $0x30] sm:$0xff]
  %v31 = vld [vmem:[%s1 + $0x38] sm:$0xff]
  %v32 = vld [vmem:[%s1 + $0x40] sm:$0xff]
  %v33 = vld [vmem:[%s1 + $0x48] sm:$0xff]
  %v34 = vld [vmem:[%s1 + $0x50] sm:$0xff]
  %v35 = vld [vmem:[%s1 + $0x58] sm:$0xff]
  %v36 = vld [vmem:[%s1 + $0x60] sm:$0xff]
  %v37 = vld [vmem:[%s1 + $0x68] sm:$0xff]
  %v38 = vld [vmem:[%s1 + $0x70] sm:$0xff]
  %v39 = vld [vmem:[%s1 + $0x78] sm:$0xff]
  %v40 = vld [vmem:[%s2] sm:$0x3]
  %v42 = vperm.slane %v40, 0
  %v43 = vperm.slane %v40, 1
  %v50 = vunpack.c.l.b16 %v20
  %v51 = vunpack.c.l.b16 %v21
  %v52 = vunpack.c.l.b16 %v22
  %v53 = vunpack.c.l.b16 %v23
  %v54 = vpack.c.b16 %v51, %v50
  %v55 = vpack.c.b16 %v53, %v52
  %v74 = vunpack.c.l.b16 %v24
  %v75 = vunpack.c.h.b16 %v24
  %v76 = vunpack.c.l.b16 %v25
  %v77 = vunpack.c.h.b16 %v25
  %v78 = vunpack.c.l.b16 %v26
  %v79 = vunpack.c.h.b16 %v26
  %v80 = vunpack.c.l.b16 %v27
  %v81 = vunpack.c.h.b16 %v27
  %v82 = vunpack.c.l.b16 %v28
  %v83 = vunpack.c.h.b16 %v28
  %v84 = vunpack.c.l.b16 %v29
  %v85 = vunpack.c.h.b16 %v29
  %v86 = vunpack.c.l.b16 %v30
  %v87 = vunpack.c.h.b16 %v30
  %v88 = vunpack.c.l.b16 %v31
  %v89 = vunpack.c.h.b16 %v31
  %v90 = vunpack.c.l.b16 %v32
  %v91 = vunpack.c.h.b16 %v32
  %v92 = vunpack.c.l.b16 %v33
  %v93 = vunpack.c.h.b16 %v33
  %v94 = vunpack.c.l.b16 %v34
  %v95 = vunpack.c.h.b16 %v34
  %v96 = vunpack.c.l.b16 %v35
  %v97 = vunpack.c.h.b16 %v35
  %v98 = vunpack.c.l.b16 %v36
  %v99 = vunpack.c.h.b16 %v36
  %v100 = vunpack.c.l.b16 %v37
  %v101 = vunpack.c.h.b16 %v37
  %v102 = vunpack.c.l.b16 %v38
  %v103 = vunpack.c.h.b16 %v38
  %v104 = vunpack.c.l.b16 %v39
  %v105 = vunpack.c.h.b16 %v39
  %v106 = vpack.c.b16 %v76, %v74
  %v107 = vpack.c.b16 %v77, %v75
  %v108 = vpack.c.b16 %v80, %v78
  %v109 = vpack.c.b16 %v81, %v79
  %v110 = vpack.c.b16 %v84, %v82
  %v111 = vpack.c.b16 %v85, %v83
  %v112 = vpack.c.b16 %v88, %v86
  %v113 = vpack.c.b16 %v89, %v87
  %v114 = vpack.c.b16 %v92, %v90
  %v115 = vpack.c.b16 %v93, %v91
  %v116 = vpack.c.b16 %v96, %v94
  %v117 = vpack.c.b16 %v97, %v95
  %v118 = vpack.c.b16 %v100, %v98
  %v119 = vpack.c.b16 %v101, %v99
  %v120 = vpack.c.b16 %v104, %v102
  %v121 = vpack.c.b16 %v105, %v103
  %138 = vmatpush.bf16.msra.mxu0 %v120
  %139 = vmatpush.bf16.msra.mxu0 %v118
  %140 = vmatpush.bf16.msra.mxu0 %v116
  %141 = vmatpush.bf16.msra.mxu0 %v114
  %142 = vmatpush.bf16.msra.mxu0 %v112
  %143 = vmatpush.bf16.msra.mxu0 %v110
  %144 = vmatpush.bf16.msra.mxu0 %v108
  %145 = vmatpush.bf16.msra.mxu0 %v106
  %146 = vmatmul.bf16.gmra.mxu0 %v54
  %v147 = vpop.f32.mrf.mxu0
  %v148 = vadd.f32 %v42, %v147
  %v149 = vpop.f32.mrf.mxu0
  %v150 = vadd.f32 %v42, %v149
  %151 = vmatmul.bf16.gmra.mxu0 %v55
  %v152 = vpop.f32.mrf.mxu0
  %v153 = vadd.f32 %v42, %v152
  %v154 = vpop.f32.mrf.mxu0
  %v155 = vadd.f32 %v42, %v154
  %156 = vdwg.mxu0
  %157 = vmatpush.bf16.msra.mxu0 %v121
  %158 = vmatpush.bf16.msra.mxu0 %v119
  %159 = vmatpush.bf16.msra.mxu0 %v117
  %160 = vmatpush.bf16.msra.mxu0 %v115
  %161 = vmatpush.bf16.msra.mxu0 %v113
  %162 = vmatpush.bf16.msra.mxu0 %v111
  %163 = vmatpush.bf16.msra.mxu0 %v109
  %164 = vmatpush.bf16.msra.mxu0 %v107
  %165 = vmatmul.bf16.gmra.mxu0 %v54
  %v166 = vpop.f32.mrf.mxu0
  %v167 = vadd.f32 %v43, %v166
  %v168 = vpop.f32.mrf.mxu0
  %v169 = vadd.f32 %v43, %v168
  %170 = vmatmul.bf16.gmra.mxu0 %v55
  %v171 = vpop.f32.mrf.mxu0
  %v172 = vadd.f32 %v43, %v171
  %v173 = vpop.f32.mrf.mxu0
  %v174 = vadd.f32 %v43, %v173
  %175 = vdwg.mxu0
  %v176 = vmul.f32 %v148, 0.5
  %v177 = vmul.f32 %v167, 0.5
  %v178 = vmul.f32 %v150, 0.5
  %v179 = vmul.f32 %v169, 0.5
  %v180 = vmul.f32 %v153, 0.5
  %v181 = vmul.f32 %v172, 0.5
  %v182 = vmul.f32 %v155, 0.5
  %v183 = vmul.f32 %v174, 0.5
  %v184 = vtanh.pop %v176
  %v185 = vtanh.pop %v177
  %v186 = vtanh.pop %v178
  %v187 = vtanh.pop %v179
  %v188 = vtanh.pop %v180
  %v189 = vtanh.pop %v181
  %v190 = vtanh.pop %v182
  %v191 = vtanh.pop %v183
  %v192 = vadd.f32 %v184, 1.0
  %v193 = vadd.f32 %v185, 1.0
  %v194 = vadd.f32 %v186, 1.0
  %v195 = vadd.f32 %v187, 1.0
  %v196 = vadd.f32 %v188, 1.0
  %v197 = vadd.f32 %v189, 1.0
  %v198 = vadd.f32 %v190, 1.0
  %v199 = vadd.f32 %v191, 1.0
  %v200 = vmul.f32 %v176, %v192
  %v201 = vmul.f32 %v177, %v193
  %v202 = vmul.f32 %v178, %v194
  %v203 = vmul.f32 %v179, %v195
  %v204 = vmul.f32 %v180, %v196
  %v205 = vmul.f32 %v181, %v197
  %v206 = vmul.f32 %v182, %v198
  %v207 = vmul.f32 %v183, %v199
  %v208 = vpack.c.bf16 %v202, %v200
  %v209 = vpack.c.bf16 %v203, %v201
  %v210 = vpack.c.bf16 %v206, %v204
  %v211 = vpack.c.bf16 %v207, %v205
  %v212 = vld [vmem:[%s3] sm:$0xff]
  %v213 = vld [vmem:[%s3 + $0x8] sm:$0xff]
  %v214 = vld [vmem:[%s3 + $0x10] sm:$0xff]
  %v215 = vld [vmem:[%s3 + $0x18] sm:$0xff]
  %v216 = vld [vmem:[%s3 + $0x20] sm:$0xff]
  %v217 = vld [vmem:[%s3 + $0x28] sm:$0xff]
  %v218 = vld [vmem:[%s3 + $0x30] sm:$0xff]
  %v219 = vld [vmem:[%s3 + $0x38] sm:$0xff]
  %v220 = vld [vmem:[%s3 + $0x40] sm:$0xff]
  %v221 = vld [vmem:[%s3 + $0x48] sm:$0xff]
  %v222 = vld [vmem:[%s3 + $0x50] sm:$0xff]
  %v223 = vld [vmem:[%s3 + $0x58] sm:$0xff]
  %v224 = vld [vmem:[%s3 + $0x60] sm:$0xff]
  %v225 = vld [vmem:[%s3 + $0x68] sm:$0xff]
  %v226 = vld [vmem:[%s3 + $0x70] sm:$0xff]
  %v227 = vld [vmem:[%s3 + $0x78] sm:$0xff]
  %v228 = vld [vmem:[%s3 + $0x80] sm:$0xff]
  %v229 = vld [vmem:[%s3 + $0x88] sm:$0xff]
  %v230 = vld [vmem:[%s3 + $0x90] sm:$0xff]
  %v231 = vld [vmem:[%s3 + $0x98] sm:$0xff]
  %v232 = vld [vmem:[%s3 + $0xa0] sm:$0xff]
  %v233 = vld [vmem:[%s3 + $0xa8] sm:$0xff]
  %v234 = vld [vmem:[%s3 + $0xb0] sm:$0xff]
  %v235 = vld [vmem:[%s3 + $0xb8] sm:$0xff]
  %v236 = vld [vmem:[%s3 + $0xc0] sm:$0xff]
  %v237 = vld [vmem:[%s3 + $0xc8] sm:$0xff]
  %v238 = vld [vmem:[%s3 + $0xd0] sm:$0xff]
  %v239 = vld [vmem:[%s3 + $0xd8] sm:$0xff]
  %v240 = vld [vmem:[%s3 + $0xe0] sm:$0xff]
  %v241 = vld [vmem:[%s3 + $0xe8] sm:$0xff]
  %v242 = vld [vmem:[%s3 + $0xf0] sm:$0xff]
  %v243 = vld [vmem:[%s3 + $0xf8] sm:$0xff]
  %v244 = vld [vmem:[%s4] sm:$0x3]
  %v246 = vperm.slane %v244, 0
  %v247 = vperm.slane %v244, 1
  %v282 = vunpack.c.l.b16 %v212
  %v283 = vunpack.c.h.b16 %v212
  %v284 = vunpack.c.l.b16 %v213
  %v285 = vunpack.c.h.b16 %v213
  %v286 = vunpack.c.l.b16 %v214
  %v287 = vunpack.c.h.b16 %v214
  %v288 = vunpack.c.l.b16 %v215
  %v289 = vunpack.c.h.b16 %v215
  %v290 = vunpack.c.l.b16 %v216
  %v291 = vunpack.c.h.b16 %v216
  %v292 = vunpack.c.l.b16 %v217
  %v293 = vunpack.c.h.b16 %v217
  %v294 = vunpack.c.l.b16 %v218
  %v295 = vunpack.c.h.b16 %v218
  %v296 = vunpack.c.l.b16 %v219
  %v297 = vunpack.c.h.b16 %v219
  %v298 = vunpack.c.l.b16 %v220
  %v299 = vunpack.c.h.b16 %v220
  %v300 = vunpack.c.l.b16 %v221
  %v301 = vunpack.c.h.b16 %v221
  %v302 = vunpack.c.l.b16 %v222
  %v303 = vunpack.c.h.b16 %v222
  %v304 = vunpack.c.l.b16 %v223
  %v305 = vunpack.c.h.b16 %v223
  %v306 = vunpack.c.l.b16 %v224
  %v307 = vunpack.c.h.b16 %v224
  %v308 = vunpack.c.l.b16 %v225
  %v309 = vunpack.c.h.b16 %v225
  %v310 = vunpack.c.l.b16 %v226
  %v311 = vunpack.c.h.b16 %v226
  %v312 = vunpack.c.l.b16 %v227
  %v313 = vunpack.c.h.b16 %v227
  %v314 = vunpack.c.l.b16 %v228
  %v315 = vunpack.c.h.b16 %v228
  %v316 = vunpack.c.l.b16 %v229
  %v317 = vunpack.c.h.b16 %v229
  %v318 = vunpack.c.l.b16 %v230
  %v319 = vunpack.c.h.b16 %v230
  %v320 = vunpack.c.l.b16 %v231
  %v321 = vunpack.c.h.b16 %v231
  %v322 = vunpack.c.l.b16 %v232
  %v323 = vunpack.c.h.b16 %v232
  %v324 = vunpack.c.l.b16 %v233
  %v325 = vunpack.c.h.b16 %v233
  %v326 = vunpack.c.l.b16 %v234
  %v327 = vunpack.c.h.b16 %v234
  %v328 = vunpack.c.l.b16 %v235
  %v329 = vunpack.c.h.b16 %v235
  %v330 = vunpack.c.l.b16 %v236
  %v331 = vunpack.c.h.b16 %v236
  %v332 = vunpack.c.l.b16 %v237
  %v333 = vunpack.c.h.b16 %v237
  %v334 = vunpack.c.l.b16 %v238
  %v335 = vunpack.c.h.b16 %v238
  %v336 = vunpack.c.l.b16 %v239
  %v337 = vunpack.c.h.b16 %v239
  %v338 = vunpack.c.l.b16 %v240
  %v339 = vunpack.c.h.b16 %v240
  %v340 = vunpack.c.l.b16 %v241
  %v341 = vunpack.c.h.b16 %v241
  %v342 = vunpack.c.l.b16 %v242
  %v343 = vunpack.c.h.b16 %v242
  %v344 = vunpack.c.l.b16 %v243
  %v345 = vunpack.c.h.b16 %v243
  %v346 = vpack.c.b16 %v284, %v282
  %v347 = vpack.c.b16 %v285, %v283
  %v348 = vpack.c.b16 %v288, %v286
  %v349 = vpack.c.b16 %v289, %v287
  %v350 = vpack.c.b16 %v292, %v290
  %v351 = vpack.c.b16 %v293, %v291
  %v352 = vpack.c.b16 %v296, %v294
  %v353 = vpack.c.b16 %v297, %v295
  %v354 = vpack.c.b16 %v300, %v298
  %v355 = vpack.c.b16 %v301, %v299
  %v356 = vpack.c.b16 %v304, %v302
  %v357 = vpack.c.b16 %v305, %v303
  %v358 = vpack.c.b16 %v308, %v306
  %v359 = vpack.c.b16 %v309, %v307
  %v360 = vpack.c.b16 %v312, %v310
  %v361 = vpack.c.b16 %v313, %v311
  %v362 = vpack.c.b16 %v316, %v314
  %v363 = vpack.c.b16 %v317, %v315
  %v364 = vpack.c.b16 %v320, %v318
  %v365 = vpack.c.b16 %v321, %v319
  %v366 = vpack.c.b16 %v324, %v322
  %v367 = vpack.c.b16 %v325, %v323
  %v368 = vpack.c.b16 %v328, %v326
  %v369 = vpack.c.b16 %v329, %v327
  %v370 = vpack.c.b16 %v332, %v330
  %v371 = vpack.c.b16 %v333, %v331
  %v372 = vpack.c.b16 %v336, %v334
  %v373 = vpack.c.b16 %v337, %v335
  %v374 = vpack.c.b16 %v340, %v338
  %v375 = vpack.c.b16 %v341, %v339
  %v376 = vpack.c.b16 %v344, %v342
  %v377 = vpack.c.b16 %v345, %v343
  %410 = vmatpush.bf16.msra.mxu0 %v360
  %411 = vmatpush.bf16.msra.mxu0 %v358
  %412 = vmatpush.bf16.msra.mxu0 %v356
  %413 = vmatpush.bf16.msra.mxu0 %v354
  %414 = vmatpush.bf16.msra.mxu0 %v352
  %415 = vmatpush.bf16.msra.mxu0 %v350
  %416 = vmatpush.bf16.msra.mxu0 %v348
  %417 = vmatpush.bf16.msra.mxu0 %v346
  %418 = vmatmul.bf16.gmra.mxu0 %v208
  %v419 = vpop.f32.mrf.mxu0
  %v420 = vadd.f32 %v246, %v419
  %v421 = vpop.f32.mrf.mxu0
  %v422 = vadd.f32 %v246, %v421
  %423 = vmatmul.bf16.gmra.mxu0 %v210
  %v424 = vpop.f32.mrf.mxu0
  %v425 = vadd.f32 %v246, %v424
  %v426 = vpop.f32.mrf.mxu0
  %v427 = vadd.f32 %v246, %v426
  %428 = vdwg.mxu0
  %429 = vmatpush.bf16.msra.mxu0 %v376
  %430 = vmatpush.bf16.msra.mxu0 %v374
  %431 = vmatpush.bf16.msra.mxu0 %v372
  %432 = vmatpush.bf16.msra.mxu0 %v370
  %433 = vmatpush.bf16.msra.mxu0 %v368
  %434 = vmatpush.bf16.msra.mxu0 %v366
  %435 = vmatpush.bf16.msra.mxu0 %v364
  %436 = vmatpush.bf16.msra.mxu0 %v362
  %437 = vmatmul.bf16.gmra.mxu0 %v209
  %v438 = vpop.f32.mrf.mxu0
  %v439 = vadd.f32 %v420, %v438
  %v440 = vpop.f32.mrf.mxu0
  %v441 = vadd.f32 %v422, %v440
  %442 = vmatmul.bf16.gmra.mxu0 %v211
  %v443 = vpop.f32.mrf.mxu0
  %v444 = vadd.f32 %v425, %v443
  %v445 = vpop.f32.mrf.mxu0
  %v446 = vadd.f32 %v427, %v445
  %447 = vdwg.mxu0
  %448 = vmatpush.bf16.msra.mxu0 %v361
  %449 = vmatpush.bf16.msra.mxu0 %v359
  %450 = vmatpush.bf16.msra.mxu0 %v357
  %451 = vmatpush.bf16.msra.mxu0 %v355
  %452 = vmatpush.bf16.msra.mxu0 %v353
  %453 = vmatpush.bf16.msra.mxu0 %v351
  %454 = vmatpush.bf16.msra.mxu0 %v349
  %455 = vmatpush.bf16.msra.mxu0 %v347
  %456 = vmatmul.bf16.gmra.mxu0 %v208
  %v457 = vpop.f32.mrf.mxu0
  %v458 = vadd.f32 %v247, %v457
  %v459 = vpop.f32.mrf.mxu0
  %v460 = vadd.f32 %v247, %v459
  %461 = vmatmul.bf16.gmra.mxu0 %v210
  %v462 = vpop.f32.mrf.mxu0
  %v463 = vadd.f32 %v247, %v462
  %v464 = vpop.f32.mrf.mxu0
  %v465 = vadd.f32 %v247, %v464
  %466 = vdwg.mxu0
  %467 = vmatpush.bf16.msra.mxu0 %v377
  %468 = vmatpush.bf16.msra.mxu0 %v375
  %469 = vmatpush.bf16.msra.mxu0 %v373
  %470 = vmatpush.bf16.msra.mxu0 %v371
  %471 = vmatpush.bf16.msra.mxu0 %v369
  %472 = vmatpush.bf16.msra.mxu0 %v367
  %473 = vmatpush.bf16.msra.mxu0 %v365
  %474 = vmatpush.bf16.msra.mxu0 %v363
  %475 = vmatmul.bf16.gmra.mxu0 %v209
  %v476 = vpop.f32.mrf.mxu0
  %v477 = vadd.f32 %v458, %v476
  %v478 = vpop.f32.mrf.mxu0
  %v479 = vadd.f32 %v460, %v478
  %480 = vmatmul.bf16.gmra.mxu0 %v211
  %v481 = vpop.f32.mrf.mxu0
  %v482 = vadd.f32 %v463, %v481
  %v483 = vpop.f32.mrf.mxu0
  %v484 = vadd.f32 %v465, %v483
  %485 = vdwg.mxu0
  %v486 = vmul.f32 %v439, 0.5
  %v487 = vmul.f32 %v477, 0.5
  %v488 = vmul.f32 %v441, 0.5
  %v489 = vmul.f32 %v479, 0.5
  %v490 = vmul.f32 %v444, 0.5
  %v491 = vmul.f32 %v482, 0.5
  %v492 = vmul.f32 %v446, 0.5
  %v493 = vmul.f32 %v484, 0.5
  %v494 = vtanh.pop %v486
  %v495 = vtanh.pop %v487
  %v496 = vtanh.pop %v488
  %v497 = vtanh.pop %v489
  %v498 = vtanh.pop %v490
  %v499 = vtanh.pop %v491
  %v500 = vtanh.pop %v492
  %v501 = vtanh.pop %v493
  %v502 = vadd.f32 %v494, 1.0
  %v503 = vadd.f32 %v495, 1.0
  %v504 = vadd.f32 %v496, 1.0
  %v505 = vadd.f32 %v497, 1.0
  %v506 = vadd.f32 %v498, 1.0
  %v507 = vadd.f32 %v499, 1.0
  %v508 = vadd.f32 %v500, 1.0
  %v509 = vadd.f32 %v501, 1.0
  %v510 = vmul.f32 %v486, %v502
  %v511 = vmul.f32 %v487, %v503
  %v512 = vmul.f32 %v488, %v504
  %v513 = vmul.f32 %v489, %v505
  %v514 = vmul.f32 %v490, %v506
  %v515 = vmul.f32 %v491, %v507
  %v516 = vmul.f32 %v492, %v508
  %v517 = vmul.f32 %v493, %v509
  %v518 = vpack.c.bf16 %v511, %v510
  %v519 = vpack.c.bf16 %v513, %v512
  %v520 = vpack.c.bf16 %v515, %v514
  %v521 = vpack.c.bf16 %v517, %v516
  %522 = vst [vmem:[%s5] sm:$0xff] %v518
  %523 = vst [vmem:[%s5 + $0x8] sm:$0xff] %v519
  %524 = vst [vmem:[%s5 + $0x10] sm:$0xff] %v520
  %525 = vst [vmem:[%s5 + $0x18] sm:$0xff] %v521
  // Predicated region
  $region22: #{rnd_network_forward.1} parent=0 // pred_check
    _
  $region23: #{rnd_network_forward.1} parent=0 // pred_check_branch
    %527 = sbr.rel (0) target = $region25
  $region24: #{rnd_network_forward.1} parent=0 // pred_region
    _
  $region25: #{rnd_network_forward.1} parent=0 // pred_fallthru
    _
  // Predicated region
  $region26: #{rnd_network_forward.1} parent=0 // pred_check
    _
  $region27: #{rnd_network_forward.1} parent=0 // pred_check_branch
    %529 = sbr.rel (0) target = $region29
  $region28: #{rnd_network_forward.1} parent=0 // pred_region
    _
  $region29: #{rnd_network_forward.1} parent=0 // pred_fallthru
    _

</llo_original>
